<compile_context>
chip_gen: v6e
topology: v6e:2x2x1
jax: 0.10.0
libtpu: 0.0.40
codegen_flags: <defaults>
</compile_context>

<pallas_src>
import functools

import jax
import jax.numpy as jnp
from jax.experimental import pallas as pl
from jax.experimental.pallas import tpu as pltpu

_MIB = 1024 * 1024


def _round_up(v, m):
    return ((v + m - 1) // m) * m


def _sublane_rows(dtype):
    """Sublane multiple for a dtype: 8 (f32), 16 (bf16), 32 (int8/fp8)."""
    bits = jnp.dtype(dtype).itemsize * 8
    return max(8, 256 // bits)


def _vmem_budgets():
    """(vmem_limit_bytes, fused_max_f32_bytes, two_pass_block_bytes) per chip gen."""
    cap = None
    try:
        cap = getattr(pltpu.get_tpu_info(), "vmem_capacity_bytes", None)
    except Exception:
        cap = None
    if cap is not None and cap >= 128 * _MIB:
        # v5e / v6e: 128 MiB VMEM per TensorCore.
        return 96 * _MIB, 16 * _MIB, 6 * _MIB
    # v7x (64 MiB per TensorCore) or unknown chip: conservative budgets.
    return 48 * _MIB, 8 * _MIB, 4 * _MIB


# ---------------------------------------------------------------------------
# Fused path: x resident in VMEM as a single block -> one kernel, one HBM pass.
# ---------------------------------------------------------------------------
def _fused_kernel(x_ref, w_ref, o_ref, *, count, eps):
    x = x_ref[...].astype(jnp.float32)                        # (rows, cols)
    col_s = jnp.sum(x, axis=0, keepdims=True)                 # (1, cols) sublane reduce
    mean = jnp.sum(col_s, axis=1, keepdims=True) / count      # (1, 1) single XLU reduce
    d = x - mean                                               # exact centered variance
    col_ss = jnp.sum(d * d, axis=0, keepdims=True)            # (1, cols)
    var = jnp.sum(col_ss, axis=1, keepdims=True) / count      # (1, 1)
    inv = 1.0 / (jnp.sqrt(var) + eps)                         # exact scalar reciprocal
    w = w_ref[...].astype(jnp.float32) * inv                  # fold inv into weight
    o_ref[...] = (x * w).astype(o_ref.dtype)


# ---------------------------------------------------------------------------
# Two-pass path (large x): pass 1 reduces to per-core partials, pass 2 scales.
# ---------------------------------------------------------------------------
def _reduce_kernel(x_ref, psum_ref, psumsq_ref, *, n_rows, ragged):
    i = pl.program_id(1)                                      # reduction axis (last)

    @pl.when(i == 0)
    def _():
        psum_ref[...] = jnp.zeros_like(psum_ref)
        psumsq_ref[...] = jnp.zeros_like(psumsq_ref)

    x = x_ref[...].astype(jnp.float32)                        # (br, cols)

    def _accum(xv):
        # Lane-shaped accumulation; the cross-lane reduce happens on the tiny
        # (n_split, 1, cols) partials in the wrapper.
        psum_ref[...] += jnp.sum(xv, axis=0, keepdims=True).reshape(psum_ref.shape)
        psumsq_ref[...] += jnp.sum(xv * xv, axis=0, keepdims=True).reshape(psumsq_ref.shape)

    if not ragged:
        _accum(x)                                             # steady state: no mask
    else:
        s = pl.program_id(0)
        is_last = jnp.logical_and(s == pl.num_programs(0) - 1,
                                  i == pl.num_programs(1) - 1)

        @pl.when(jnp.logical_not(is_last))
        def _():
            _accum(x)

        @pl.when(is_last)
        def _():
            # Only the final (ragged) tile pays for the row mask.
            bm = x.shape[0]
            blk = s * pl.num_programs(1) + i
            row = blk * bm + jax.lax.broadcasted_iota(jnp.int32, x.shape, 0)
            _accum(jnp.where(row < n_rows, x, 0.0))


def _normalize_kernel(x_ref, w_ref, o_ref):
    # w already carries 1/(std + eps); single multiply + cast per element.
    o_ref[...] = (x_ref[...].astype(jnp.float32) * w_ref[...]).astype(o_ref.dtype)


def layer_norm(x, weight=None, eps=1e-5, *, block_rows=None,
               force_two_pass=False, donate_x=False):
    """GIND LayerNorm (batch=None). x: [N, C], weight: [C] or None -> [N, C]."""
    n, c = x.shape
    if weight is None:                      # affine=False
        weight = jnp.ones((c,), dtype=jnp.float32)
    count = float(n) * float(c)
    vmem_limit, fused_max_f32, two_pass_block = _vmem_budgets()

    # Lane-dense fold: pack f C-wide rows into one (f*C)-wide lane row, where f
    # is the largest power of two with f | (128 // C) and N % f == 0.  The
    # reshape is free (row-major contiguous).  When N defeats the full fold we
    # keep the largest partial fold rather than padding: pad + unpad copies
    # would add whole extra HBM passes to a memory-bound op.
    fold = 128 // c if (c < 128 and 128 % c == 0) else 1
    while fold > 1 and n % fold != 0:
        fold //= 2
    if fold > 1:
        rows, cols = n // fold, c * fold
        x2 = x.reshape(rows, cols)                 # free: contiguous row-major
        w2 = jnp.tile(weight, fold).reshape(1, cols)
    else:
        rows, cols = n, c
        x2 = x
        w2 = weight.reshape(1, c)

    # Only enable if x may be overwritten (caller donates it).
    io_alias = {0: 0} if donate_x else {}

    x_f32_bytes = rows * cols * 4
    if not force_two_pass and x_f32_bytes <= fused_max_f32:
        # Single fused kernel: one read + one write of x through HBM.
        out2 = pl.pallas_call(
            functools.partial(_fused_kernel, count=count, eps=float(eps)),
            out_shape=jax.ShapeDtypeStruct((rows, cols), x.dtype),
            compiler_params=pltpu.CompilerParams(vmem_limit_bytes=vmem_limit),
            input_output_aliases=io_alias,
        )(x2, w2)
    else:
        itemsize = jnp.dtype(x.dtype).itemsize
        if block_rows is None:
            br = max(1, two_pass_block // (cols * itemsize))
        else:
            br = block_rows
        sub = _sublane_rows(x.dtype)
        br = _round_up(min(br, rows), sub)
        n_blocks = pl.cdiv(rows, br)
        ragged = (rows % br) != 0

        # Split pass 1 across TensorCores when the block count allows it: the
        # leading "parallel" axis is sharded across v7x's two cores; on
        # single-TC v5e/v6e it simply loops (no extra work, no extra traffic).
        n_split = 2 if (n_blocks >= 4 and n_blocks % 2 == 0) else 1
        nb_per = n_blocks // n_split

        psum, psumsq = pl.pallas_call(
            functools.partial(_reduce_kernel, n_rows=rows, ragged=ragged),
            out_shape=(jax.ShapeDtypeStruct((n_split, 1, cols), jnp.float32),
                       jax.ShapeDtypeStruct((n_split, 1, cols), jnp.float32)),
            grid_spec=pltpu.PrefetchScalarGridSpec(
                num_scalar_prefetch=0,
                grid=(n_split, nb_per),
                in_specs=[pl.BlockSpec((br, cols),
                                       lambda s, i: (s * nb_per + i, 0))],
                out_specs=[pl.BlockSpec((1, 1, cols), lambda s, i: (s, 0, 0)),
                           pl.BlockSpec((1, 1, cols), lambda s, i: (s, 0, 0))],
            ),
            compiler_params=pltpu.CompilerParams(
                dimension_semantics=("parallel", "arbitrary"),
                vmem_limit_bytes=vmem_limit),
        )(x2)

        # Finalize inv = 1/(std + eps) from the tiny per-core partials and fold
        # it into the weight ONCE, so pass 2 streams only (x, weight*inv).
        # TODO(synk): E[x^2] - mean^2 in f32 is cancellation-prone when
        # |mean| >> std over very large inputs; a shifted / Welford pass-1
        # accumulation would fix that at the cost of extra VPU work.
        s = jnp.sum(psum)
        ss = jnp.sum(psumsq)
        mean = s / count
        var = jnp.maximum(ss / count - mean * mean, 0.0)
        inv = 1.0 / (jnp.sqrt(var) + eps)
        w_scaled = w2.astype(jnp.float32) * inv                  # (1, cols)

        # Pass 2: out = x * (weight * inv)  (embarrassingly parallel).
        # Ragged last tile: OOB reads are garbage but purely elementwise and
        # the corresponding OOB writes are clipped by Pallas.
        out2 = pl.pallas_call(
            _normalize_kernel,
            out_shape=jax.ShapeDtypeStruct((rows, cols), x.dtype),
            grid_spec=pltpu.PrefetchScalarGridSpec(
                num_scalar_prefetch=0,
                grid=(n_blocks,),
                in_specs=[pl.BlockSpec((br, cols), lambda i: (i, 0)),
                          pl.BlockSpec((1, cols), lambda i: (0, 0))],
                out_specs=pl.BlockSpec((br, cols), lambda i: (i, 0)),
            ),
            compiler_params=pltpu.CompilerParams(
                dimension_semantics=("parallel",),
                vmem_limit_bytes=vmem_limit),
            input_output_aliases=io_alias,
        )(x2, w_scaled)

    if (rows, cols) != (n, c):
        return out2.reshape(n, c)
    return out2


if __name__ == "__main__":
    key = jax.random.PRNGKey(0)
    eps = 1e-5

    def reference(x, w, e):
        xf = x.astype(jnp.float32)
        std = jnp.std(xf)                       # population std (unbiased=False)
        return (xf / (std + e)) * w.astype(jnp.float32)

    def check(out, x, w, e, atol, rtol):
        ref = reference(x, w, e).astype(out.dtype)
        assert out.shape == x.shape and out.dtype == x.dtype
        assert jnp.allclose(out.astype(jnp.float32), ref.astype(jnp.float32),
                            atol=atol, rtol=rtol), "mismatch vs reference"

    k0, k1, k2, k3, k4 = jax.random.split(key, 5)

    # (A) fused path, full lane-dense fold: (64, 32) -> (16, 128).
    xa = jax.random.normal(k0, (64, 32), dtype=jnp.float32)
    wa = jnp.full((32,), 1.0, dtype=jnp.float32)   # reset_parameters(): C < 256 -> 1.0
    oa = jax.block_until_ready(layer_norm(xa, wa, eps=eps))
    check(oa, xa, wa, eps, 1e-5, 1e-5)

    # (B) two-pass, partial fold (50 % 4 != 0 -> fold 2 -> lane width 64),
    #     ragged last tile exercises the gated row mask.
    xb = jax.random.normal(k1, (50, 32), dtype=jnp.float32) + 0.7
    wb = jnp.linspace(0.5, 1.5, 32, dtype=jnp.float32)
    ob = jax.block_until_ready(
        layer_norm(xb, wb, eps=eps, block_rows=16, force_two_pass=True))
    check(ob, xb, wb, eps, 1e-5, 1e-5)

    # (C) two-pass, full fold, pass-1 grid split into (2, 2) blocks.
    xc = jax.random.normal(k2, (256, 32), dtype=jnp.float32) * 2.0
    wc = jnp.linspace(0.25, 2.0, 32, dtype=jnp.float32)
    oc = jax.block_until_ready(
        layer_norm(xc, wc, eps=eps, block_rows=16, force_two_pass=True))
    check(oc, xc, wc, eps, 1e-5, 1e-5)

    # (D) bf16 input: block rows rounded to the 16-row sublane multiple, ragged.
    xd = (jax.random.normal(k3, (48, 64), dtype=jnp.float32) * 1.5).astype(jnp.bfloat16)
    wd = jnp.full((64,), 1.0, dtype=jnp.float32)
    od = jax.block_until_ready(
        layer_norm(xd, wd, eps=eps, block_rows=8, force_two_pass=True))
    check(od, xd, wd, eps, 3e-2, 3e-2)

    # (E) two-pass with partial fold + core split + ragged tail all at once.
    xe = jax.random.normal(k4, (250, 32), dtype=jnp.float32) - 1.3
    we = jnp.linspace(1.0, 0.5, 32, dtype=jnp.float32)
    oe = jax.block_until_ready(
        layer_norm(xe, we, eps=eps, block_rows=16, force_two_pass=True))
    check(oe, xe, we, eps, 1e-5, 1e-5)

    print("KERNEL_OK")
</pallas_src>

<mosaic_0001>
module attributes {stable_mosaic.version = 11 : i64} {
  func.func @_fused_kernel(%arg0: memref<16x128xf32, #tpu.memory_space<vmem>>, %arg1: memref<1x128xf32, #tpu.memory_space<vmem>>, %arg2: memref<16x128xf32, #tpu.memory_space<vmem>>) attributes {dimension_semantics = [], scalar_prefetch = 0 : i64, scratch_operands = 0 : i64, tpu.core_type = #tpu.core_type<tc>} {
    %c0 = arith.constant 0 : index
    %c0_0 = arith.constant 0 : index
    %0 = vector.load %arg0[%c0, %c0_0] : memref<16x128xf32, #tpu.memory_space<vmem>>, vector<16x128xf32>
    %cst = arith.constant dense<0.000000e+00> : vector<128xf32>
    %1 = vector.multi_reduction <add>, %0, %cst [0] : vector<16x128xf32> to vector<128xf32>
    %2 = vector.shape_cast %1 : vector<128xf32> to vector<1x128xf32>
    %cst_1 = arith.constant dense<0.000000e+00> : vector<1xf32>
    %3 = vector.multi_reduction <add>, %2, %cst_1 [1] : vector<1x128xf32> to vector<1xf32>
    %4 = vector.shape_cast %3 : vector<1xf32> to vector<1x1xf32>
    %cst_2 = arith.constant 2.048000e+03 : f32
    %5 = vector.broadcast %cst_2 : f32 to vector<1x1xf32>
    %6 = arith.divf %4, %5 : vector<1x1xf32>
    %7 = vector.broadcast %6 : vector<1x1xf32> to vector<16x128xf32>
    %8 = arith.subf %0, %7 : vector<16x128xf32>
    %9 = arith.mulf %8, %8 : vector<16x128xf32>
    %cst_3 = arith.constant dense<0.000000e+00> : vector<128xf32>
    %10 = vector.multi_reduction <add>, %9, %cst_3 [0] : vector<16x128xf32> to vector<128xf32>
    %11 = vector.shape_cast %10 : vector<128xf32> to vector<1x128xf32>
    %cst_4 = arith.constant dense<0.000000e+00> : vector<1xf32>
    %12 = vector.multi_reduction <add>, %11, %cst_4 [1] : vector<1x128xf32> to vector<1xf32>
    %13 = vector.shape_cast %12 : vector<1xf32> to vector<1x1xf32>
    %cst_5 = arith.constant 2.048000e+03 : f32
    %14 = vector.broadcast %cst_5 : f32 to vector<1x1xf32>
    %15 = arith.divf %13, %14 : vector<1x1xf32>
    %16 = math.sqrt %15 : vector<1x1xf32>
    %cst_6 = arith.constant 9.99999974E-6 : f32
    %17 = vector.broadcast %cst_6 : f32 to vector<1x1xf32>
    %18 = arith.addf %16, %17 : vector<1x1xf32>
    %cst_7 = arith.constant 1.000000e+00 : f32
    %19 = vector.broadcast %cst_7 : f32 to vector<1x1xf32>
    %20 = arith.divf %19, %18 : vector<1x1xf32>
    %c0_8 = arith.constant 0 : index
    %c0_9 = arith.constant 0 : index
    %21 = vector.load %arg1[%c0_8, %c0_9] : memref<1x128xf32, #tpu.memory_space<vmem>>, vector<1x128xf32>
    %22 = vector.broadcast %20 : vector<1x1xf32> to vector<1x128xf32>
    %23 = arith.mulf %21, %22 : vector<1x128xf32>
    %24 = vector.broadcast %23 : vector<1x128xf32> to vector<16x128xf32>
    %25 = arith.mulf %0, %24 : vector<16x128xf32>
    %c0_10 = arith.constant 0 : index
    %c0_11 = arith.constant 0 : index
    %26 = vector.load %arg2[%c0_10, %c0_11] : memref<16x128xf32, #tpu.memory_space<vmem>>, vector<16x128xf32>
    tpu.vector_store %arg2[%c0_10, %c0_11], %25 {strides = array<i32>} : memref<16x128xf32, #tpu.memory_space<vmem>>, vector<16x128xf32>,
    return
  }
}

</mosaic_0001>

<llo_original>
// kernel: tpu_custom_call.1
$region0: #{tpu_custom_call.1}
  #allocation0 [shape = 'u32[]', space=smem, size = 0x4, offset = 0x4, fixed_abs, tag = 'smem constant byte address 0x4 - core index']
  #allocation1 [shape = 'u32[144,128]{1,0:T(1,128)}', space=vmem, size = 0x12000, scoped, tag = 'internal scratch']
  %s0 = inlined_call_operand.hbm [shape: f32[16,128], index: 0, kind: input, shape index: {}]
  %s1 = inlined_call_operand.vmem [shape: f32[1,128], index: 1, kind: input, shape index: {}]
  %s2 = inlined_call_operand.hbm [shape: f32[16,128], index: 2, kind: output, shape index: {}]
  %s3 = sld [smem:[#allocation0]]
  $region22: #{tpu_custom_call.1} parent=0
    _
  %s5 = ssub.s32 1, %s3
  %s6 = scalar_select 0, %s5, %s3
  $region1: #{tpu_custom_call.1} parent=0
    #allocation2 [shape = 'u8[8192]{0}', space=vmem, size = 0x2000, scoped, tag = 'input window, operand 0, single buffered']
    #allocation3 [shape = 's32[1]{0}', space=sflag, size = 0x4, scoped, tag = 'scoped memory for tpu_custom_call.1']
    #allocation4 [shape = 's32[1]{0}', space=sflag, size = 0x4, scoped, tag = 'scoped memory for tpu_custom_call.1']
    #allocation5 [shape = 'u8[8192]{0}', space=vmem, size = 0x2000, scoped, tag = 'output window, operand 0, single buffered']
    %7 = vsyncpa [#allocation3], 0
    %8 = vsyncpa [#allocation4], 0
    // Predicated region
    $region2: #{tpu_custom_call.1} parent=1 // pred_check
      _
    $region3: #{tpu_custom_call.1} parent=1 // pred_check_branch
      %10 = sbr.rel (0) target = $region5
    $region4: #{tpu_custom_call.1} parent=1 // pred_region
      %s12 = ssub.s32 256, 256
      %13 = vsyncadd [#allocation3], %s12
      %s14 = sshll.u32 [#allocation2], 4
      %s15 = int_to_ptr.vmem [resolvable:$true] %s14
      %20 = dma.hbm_to_vmem [thread:$0]  %s0, 256, %s15, [#allocation3], 128, 128, 8
    $region5: #{tpu_custom_call.1} parent=1 // pred_fallthru
      _
    // Predicated region
    $region6: #{tpu_custom_call.1} parent=1 // pred_check
      _
    $region7: #{tpu_custom_call.1} parent=1 // pred_check_branch
      %22 = sbr.rel (0) target = $region9
    $region8: #{tpu_custom_call.1} parent=1 // pred_region
      _
    $region9: #{tpu_custom_call.1} parent=1 // pred_fallthru
      _
    // Predicated region
    $region10: #{tpu_custom_call.1} parent=1 // pred_check
      _
    $region11: #{tpu_custom_call.1} parent=1 // pred_check_branch
      %24 = sbr.rel (0) target = $region13
    $region12: #{tpu_custom_call.1} parent=1 // pred_region
      %25 = dma.done [#allocation3], 256
    $region13: #{tpu_custom_call.1} parent=1 // pred_fallthru
      _
    %v26 = vld [vmem:[#allocation2] sm:$0xff]
    %v27 = vld [vmem:[#allocation2 + $0x8] sm:$0xff]
    %v28 = vadd.f32 %v26, %v27
    %v29 = vrot.slane %v28, 4
    %v30 = vadd.f32 %v28, %v29
    %v31 = vrot.slane %v30, 2
    %v32 = vadd.f32 %v30, %v31
    %v33 = vrot.slane %v32, 1
    %v34 = vadd.f32 %v32, %v33
    %35 = vadd.xlane.f32.xlu0 %v34
    %v36 = vpop.xlane.xlu0 %35
    %v37 = vrcp.pop 2048.0
    %v38 = vmul.f32 %v36, %v37
    %v39 = vsub.f32 %v26, %v38
    %v40 = vsub.f32 %v27, %v38
    %v41 = vmul.f32 %v39, %v39
    %v42 = vmul.f32 %v40, %v40
    %v43 = vadd.f32 %v41, %v42
    %v44 = vrot.slane %v43, 4
    %v45 = vadd.f32 %v43, %v44
    %v46 = vrot.slane %v45, 2
    %v47 = vadd.f32 %v45, %v46
    %v48 = vrot.slane %v47, 1
    %v49 = vadd.f32 %v47, %v48
    %50 = vadd.xlane.f32.xlu0 %v49
    %v51 = vpop.xlane.xlu0 %50
    %v52 = vmul.f32 %v51, %v37
    %v53 = vrsqrt.pop %v52
    %v54 = vmul.f32 %v52, %v53
    %vm55 = vcmp.eq.f32.partialorder %v52, inf
    %v56 = vsel %vm55, %v52, %v54
    %vm57 = vcmp.eq.f32.partialorder %v52, 0.0
    %v58 = vand.u32 %v52, 2147483648
    %v59 = vsel %vm57, %v58, %v56
    %v60 = vadd.f32 %v59, 1e-05
    %v61 = vrcp.pop %v60
    %v62 = vmul.f32 1.0, %v61
    %v63 = vld [vmem:[%s1] sm:$0x1]
    %v64 = vmul.f32 %v63, %v62
    %v66 = vlaneseq
    %v67 = vshrl.u32 %v66, 7
    %v68 = vsub.s32 0, %v67
    %v69 = vrot.slane %v64, %v68
    %v71 = vmul.f32 %v26, %v69
    %v72 = vmul.f32 %v27, %v69
    %73 = vst [vmem:[#allocation5] sm:$0xff] %v71
    %74 = vst [vmem:[#allocation5 + $0x8] sm:$0xff] %v72
    // Predicated region
    $region14: #{tpu_custom_call.1} parent=1 // pred_check
      _
    $region15: #{tpu_custom_call.1} parent=1 // pred_check_branch
      %76 = sbr.rel (0) target = $region17
    $region16: #{tpu_custom_call.1} parent=1 // pred_region
      %s78 = ssub.s32 256, 256
      %79 = vsyncadd [#allocation4], %s78
      %s80 = sshll.u32 [#allocation5], 4
      %s81 = int_to_ptr.vmem [resolvable:$true] %s80
      %86 = dma.vmem_to_hbm [thread:$0]  %s81, 256, %s2, [#allocation4], 128, 128, 8
    $region17: #{tpu_custom_call.1} parent=1 // pred_fallthru
      _
    // Predicated region
    $region18: #{tpu_custom_call.1} parent=1 // pred_check
      _
    $region19: #{tpu_custom_call.1} parent=1 // pred_check_branch
      %88 = sbr.rel (0) target = $region21
    $region20: #{tpu_custom_call.1} parent=1 // pred_region
      %89 = dma.done [#allocation4], 256
    $region21: #{tpu_custom_call.1} parent=1 // pred_fallthru
      _
    %90 = vsyncpa [#allocation3], 1
    %91 = vsyncpa [#allocation4], 1

</llo_original>
